<compile_context>
chip_gen: v5e
topology: v5e:2x2
jax: 0.10.0
libtpu: 0.0.40
codegen_flags: <defaults>
</compile_context>

<pallas_src>
import functools

import jax
import jax.numpy as jnp
from jax import lax
from jax.experimental import pallas as pl
from jax.experimental.pallas import tpu as pltpu


def _round_up(x: int, m: int) -> int:
    return ((x + m - 1) // m) * m


def _vmem_budget_bytes() -> int:
    """Scoped-VMEM budget with headroom (v7x: 64 MiB/TC, v5e/v6e: 128 MiB)."""
    cap = None
    try:
        info = pltpu.get_tpu_info()
        cap = getattr(info, "vmem_capacity_bytes", None)
    except Exception:
        cap = None
    if not cap:
        cap = 64 * 1024 * 1024            # conservative fallback = v7x per-TC
    return max(32 * 1024 * 1024, min(int(cap) - (12 << 20), 100 << 20))


# ---------------------------------------------------------------------------
# Prologue: h2^T = tanh(alpha * (nv2 @ W2^T + b2))^T, emitted as (D, Np).
# ---------------------------------------------------------------------------
def _nodevec_t_kernel(x_ref, wt_ref, b_ref, o_ref, *, alpha: float):
    h = jnp.tanh(alpha * (jnp.dot(x_ref[...], wt_ref[...],
                                  preferred_element_type=jnp.float32)
                          + b_ref[...]))
    # One-time XLU transpose here so the main kernel's matmul is standard
    # (TM,D)@(D,Np) with no per-step transposed contraction of h2.
    o_ref[...] = h.T.astype(o_ref.dtype)


def _nodevec_t(x, wt, b, *, alpha: float, tc: int, out_dtype):
    np_, d = x.shape
    return pl.pallas_call(
        functools.partial(_nodevec_t_kernel, alpha=alpha),
        out_shape=jax.ShapeDtypeStruct((d, np_), out_dtype),
        grid=(np_ // tc,),
        in_specs=[pl.BlockSpec((tc, d), lambda i: (i, 0)),
                  pl.BlockSpec((d, d), lambda i: (0, 0)),
                  pl.BlockSpec((1, d), lambda i: (0, 0))],
        out_specs=pl.BlockSpec((d, tc), lambda i: (0, i)),
        compiler_params=pltpu.CompilerParams(
            dimension_semantics=("parallel",)),
    )(x, wt, b)


# ---------------------------------------------------------------------------
# Main kernel: fused h1, similarity matmul, per-row top-k, deferred relu∘tanh.
# ---------------------------------------------------------------------------
def _adj_topk_kernel(nv1_ref, w1t_ref, b1_ref, h2t_ref, o_ref, *,
                     alpha: float, k: int, n_valid: int):
    # Fused h1 prologue for this row block.
    h1 = jnp.tanh(alpha * (jnp.dot(nv1_ref[...], w1t_ref[...],
                                   preferred_element_type=jnp.float32)
                           + b1_ref[...]))
    # Similarity: (TM, D) @ (D, Np); h2 was emitted pre-transposed.
    a = jnp.dot(h1.astype(h2t_ref.dtype), h2t_ref[...],
                preferred_element_type=jnp.float32)

    np_cols = a.shape[-1]
    neg_inf = jnp.float32(-jnp.inf)
    col = lax.broadcasted_iota(jnp.int32, (1, np_cols), 1)   # (1, Np) row iota

    # Top-k selection on the RAW scores (relu∘tanh is monotone -> identical
    # output).  Padding / invalidation sentinel must be -inf since raw scores
    # can be negative.  Skip the padding mask entirely when N % 128 == 0.
    if n_valid < np_cols:
        work = jnp.where(col < n_valid, a, neg_inf)
    else:
        work = a

    # torch.topk tie semantics: first index wins (argmax returns first max).
    # TODO(synk): for Np >= ~1024 and larger k, a per-128-lane-chunk
    # hierarchical argmax would cut XLU/VMEM work further, but it needs a
    # per-row dynamic 128-lane gather with no clean Mosaic lowering today.
    for _ in range(k):
        amax = jnp.argmax(work, axis=-1, keepdims=True)    # (TM, 1)
        work = jnp.where(col == amax, neg_inf, work)       # invalidate winner

    # Selected positions are exactly the -inf entries of `work` (padded columns
    # are also -inf; the wrapper slices them off whenever pad > 0).
    sel = work == neg_inf
    o_ref[...] = jnp.maximum(jnp.tanh(alpha * jnp.where(sel, a, 0.0)), 0.0)


# ---------------------------------------------------------------------------
# Wrapper reproducing graph_directed.forward (static_feat=None path).
# ---------------------------------------------------------------------------
def graph_directed_forward(idx, emb1, emb2, w1, b1, w2, b2, *, k, alpha=3.0,
                           block_rows=128, use_bf16=False):
    n = int(idx.shape[0])
    d = int(emb1.shape[1])
    assert k <= n, "k must be <= number of selected nodes"

    # Embedding gather (glue; XLA gather is fine here).
    nv1 = emb1[idx, :]
    nv2 = emb2[idx, :]

    # bf16 operands for the N x N matmul (f32 accumulation).  Beneficial on
    # v5e as well as v6e/v7x (all MXUs are bf16-native).
    mm_dtype = jnp.bfloat16 if use_bf16 else jnp.float32
    itemsize = jnp.dtype(mm_dtype).itemsize

    # Columns padded to a multiple of 128 (lane-dense, unmasked stores).
    np_ = _round_up(max(n, 128), 128)

    # Row-block size: shrink until the per-step VMEM footprint fits the
    # generation-specific budget, then clamp for small N so padded rows don't
    # burn top-k work.
    vmem_budget = _vmem_budget_bytes()

    def footprint(tm_):
        return (2 * tm_ * np_ * 4          # out double-buffer
                + 4 * tm_ * np_ * 4        # a / work / sel / out temporaries
                + 2 * np_ * d * itemsize   # resident h2^T (double-buffered)
                + 4 * tm_ * d * 4)         # nv1 block + h1

    tm = max(8, (block_rows // 8) * 8)
    while tm > 8 and footprint(tm) > vmem_budget:
        tm = max(8, (tm // 2 // 8) * 8)
    tm = min(tm, max(8, _round_up(n, 8)))
    rows_p = _round_up(n, tm)

    nv1p = jnp.pad(nv1, ((0, rows_p - n), (0, 0)))
    nv2p = jnp.pad(nv2, ((0, np_ - n), (0, 0)))

    # One-shot h2 prologue, emitted pre-transposed as (D, Np).
    # TODO(synk): mark constant-index operands (w2t/b2 here, w1t/b1/h2t below)
    # with pipeline_mode=pl.Buffered(1) once single-buffering is validated.
    h2t = _nodevec_t(nv2p, w2.T, b2.reshape(1, d), alpha=float(alpha),
                     tc=128, out_dtype=mm_dtype)

    cost = pl.CostEstimate(
        flops=2 * rows_p * np_ * d + 2 * rows_p * d * d,
        transcendentals=rows_p * np_ + rows_p * d,
        bytes_accessed=4 * rows_p * np_ + 4 * rows_p * d + np_ * d * itemsize)

    kern = functools.partial(_adj_topk_kernel, alpha=float(alpha), k=int(k),
                             n_valid=n)
    adj_p = pl.pallas_call(
        kern,
        out_shape=jax.ShapeDtypeStruct((rows_p, np_), jnp.float32),
        grid=(rows_p // tm,),
        in_specs=[pl.BlockSpec((tm, d), lambda i: (i, 0)),     # nv1 row block
                  pl.BlockSpec((d, d), lambda i: (0, 0)),      # W1^T resident
                  pl.BlockSpec((1, d), lambda i: (0, 0)),      # b1 resident
                  pl.BlockSpec((d, np_), lambda i: (0, 0))],   # h2^T resident
        out_specs=pl.BlockSpec((tm, np_), lambda i: (i, 0)),   # lane-dense rows
        compiler_params=pltpu.CompilerParams(
            # TODO(synk): verify in a trace that row blocks shard across both
            # v7x TensorCores; switch to pltpu.CORE_PARALLEL if they do not.
            dimension_semantics=("parallel",),
            vmem_limit_bytes=vmem_budget),
        cost_estimate=cost,
    )(nv1p, w1.T, b1.reshape(1, d), h2t)

    if rows_p == n and np_ == n:
        return adj_p            # no padding -> avoid an n^2 epilogue copy
    return adj_p[:n, :n]


# ---------------------------------------------------------------------------
# Pure-JAX reference mirroring the PyTorch forward.
# ---------------------------------------------------------------------------
def _reference(idx, emb1, emb2, w1, b1, w2, b2, *, k, alpha=3.0):
    nv1 = jnp.tanh(alpha * (emb1[idx] @ w1.T + b1))
    nv2 = jnp.tanh(alpha * (emb2[idx] @ w2.T + b2))
    a = nv1 @ nv2.T
    adj = jax.nn.relu(jnp.tanh(alpha * a))
    s1, t1 = lax.top_k(adj, k)
    mask = jnp.zeros_like(adj)
    rows = jnp.arange(adj.shape[0])[:, None]
    mask = mask.at[rows, t1].set(1.0)
    return adj * mask


if __name__ == "__main__":
    # Small synthetic config consistent with the module.
    nnodes, dim, k, alpha = 10, 32, 4, 3.0
    n_idx = 8

    key = jax.random.PRNGKey(0)
    k_e1, k_e2, k_w1, k_b1, k_w2, k_b2 = jax.random.split(key, 6)

    # nn.Embedding default ~ N(0,1); nn.Linear default ~ U(-1/sqrt(in), 1/sqrt(in)).
    emb1 = jax.random.normal(k_e1, (nnodes, dim), dtype=jnp.float32)
    emb2 = jax.random.normal(k_e2, (nnodes, dim), dtype=jnp.float32)
    bound = 1.0 / jnp.sqrt(dim)
    w1 = jax.random.uniform(k_w1, (dim, dim), jnp.float32, -bound, bound)
    b1 = jax.random.uniform(k_b1, (dim,), jnp.float32, -bound, bound)
    w2 = jax.random.uniform(k_w2, (dim, dim), jnp.float32, -bound, bound)
    b2 = jax.random.uniform(k_b2, (dim,), jnp.float32, -bound, bound)

    idx = jnp.arange(n_idx, dtype=jnp.int32)

    # f32 path: should match the reference closely.
    adj = graph_directed_forward(idx, emb1, emb2, w1, b1, w2, b2, k=k, alpha=alpha)
    adj = jax.block_until_ready(adj)
    ref = _reference(idx, emb1, emb2, w1, b1, w2, b2, k=k, alpha=alpha)
    assert adj.shape == (n_idx, n_idx)
    assert jnp.allclose(adj, ref, atol=5e-5, rtol=5e-5), "mismatch vs reference"

    # bf16-operand path (beneficial on v5e/v6e/v7x MXUs): sanity checks only,
    # since bf16 similarity can legitimately flip near-tied top-k selections.
    adj_bf = graph_directed_forward(idx, emb1, emb2, w1, b1, w2, b2, k=k,
                                    alpha=alpha, use_bf16=True)
    adj_bf = jax.block_until_ready(adj_bf)
    assert adj_bf.shape == (n_idx, n_idx)
    assert bool(jnp.all(jnp.isfinite(adj_bf)))
    assert bool(jnp.all(jnp.sum(adj_bf > 0, axis=1) <= k))

    print("KERNEL_OK")
</pallas_src>

<mosaic_0001>
module attributes {stable_mosaic.version = 11 : i64} {
  func.func @_nodevec_t_kernel(%arg0: i32, %arg1: memref<128x32xf32, #tpu.memory_space<vmem>>, %arg2: memref<32x32xf32, #tpu.memory_space<vmem>>, %arg3: memref<1x32xf32, #tpu.memory_space<vmem>>, %arg4: memref<32x128xf32, #tpu.memory_space<vmem>>) attributes {dimension_semantics = [#tpu.dimension_semantics<parallel>], iteration_bounds = array<i64: 1>, scalar_prefetch = 0 : i64, scratch_operands = 0 : i64, tpu.core_type = #tpu.core_type<tc>, window_params = [{transform_indices = @transform_0, window_bounds = array<i64: 128, 32>}, {pipeline_mode = #tpu.pipeline_mode<synchronous>, transform_indices = @transform_1, window_bounds = array<i64: 32, 32>}, {pipeline_mode = #tpu.pipeline_mode<synchronous>, transform_indices = @transform_2, window_bounds = array<i64: 1, 32>}, {transform_indices = @transform_3, window_bounds = array<i64: 32, 128>}]} {
    %c0 = arith.constant 0 : index
    %c0_0 = arith.constant 0 : index
    %0 = vector.load %arg1[%c0, %c0_0] : memref<128x32xf32, #tpu.memory_space<vmem>>, vector<128x32xf32>
    %c0_1 = arith.constant 0 : index
    %c0_2 = arith.constant 0 : index
    %1 = vector.load %arg2[%c0_1, %c0_2] : memref<32x32xf32, #tpu.memory_space<vmem>>, vector<32x32xf32>
    %cst = arith.constant dense<0.000000e+00> : vector<128x32xf32>
    %2 = tpu.matmul %0, %1, %cst {dimension_numbers = #tpu.dot_dimension_numbers<[1], [0], [0], [1], [0, 0, 1, 1], [], []>} : vector<128x32xf32>, vector<32x32xf32>, vector<128x32xf32> -> vector<128x32xf32>
    %c0_3 = arith.constant 0 : index
    %c0_4 = arith.constant 0 : index
    %3 = vector.load %arg3[%c0_3, %c0_4] : memref<1x32xf32, #tpu.memory_space<vmem>>, vector<1x32xf32>
    %4 = vector.broadcast %3 : vector<1x32xf32> to vector<128x32xf32>
    %5 = arith.addf %2, %4 : vector<128x32xf32>
    %cst_5 = arith.constant 3.000000e+00 : f32
    %6 = vector.broadcast %cst_5 : f32 to vector<128x32xf32>
    %7 = arith.mulf %6, %5 : vector<128x32xf32>
    %8 = math.tanh %7 : vector<128x32xf32>
    %9 = tpu.transpose %8, [1, 0] : vector<128x32xf32> -> vector<32x128xf32>
    %c0_6 = arith.constant 0 : index
    %c0_7 = arith.constant 0 : index
    %10 = vector.load %arg4[%c0_6, %c0_7] : memref<32x128xf32, #tpu.memory_space<vmem>>, vector<32x128xf32>
    tpu.vector_store %arg4[%c0_6, %c0_7], %9 {strides = array<i32>} : memref<32x128xf32, #tpu.memory_space<vmem>>, vector<32x128xf32>,
    return
  }
  func.func @transform_0(%arg0: i32) -> (i32, i32) {
    %c0_i32 = arith.constant 0 : i32
    %c0_i32_0 = arith.constant 0 : i32
    return %arg0, %c0_i32 : i32, i32
  }
  func.func @transform_1(%arg0: i32) -> (i32, i32) {
    %c0_i32 = arith.constant 0 : i32
    %c0_i32_0 = arith.constant 0 : i32
    %c0_i32_1 = arith.constant 0 : i32
    return %c0_i32, %c0_i32_0 : i32, i32
  }
  func.func @transform_2(%arg0: i32) -> (i32, i32) {
    %c0_i32 = arith.constant 0 : i32
    %c0_i32_0 = arith.constant 0 : i32
    %c0_i32_1 = arith.constant 0 : i32
    return %c0_i32, %c0_i32_0 : i32, i32
  }
  func.func @transform_3(%arg0: i32) -> (i32, i32) {
    %c0_i32 = arith.constant 0 : i32
    %c0_i32_0 = arith.constant 0 : i32
    return %c0_i32, %arg0 : i32, i32
  }
}

</mosaic_0001>

<llo_original>
// kernel: tpu_custom_call.1
$region0: #{tpu_custom_call.1}
  #allocation0 [shape = 'u32[]', space=smem, size = 0x4, offset = 0x4, fixed_abs, tag = 'smem constant byte address 0x4 - core index']
  #allocation1 [shape = 'u32[72,128]{1,0:T(1,128)}', space=vmem, size = 0x9000, scoped, tag = 'internal scratch']
  %s0 = inlined_call_operand.vmem [shape: f32[128,32], index: 0, kind: input, shape index: {}]
  %s1 = inlined_call_operand.vmem [shape: f32[32,32], index: 1, kind: input, shape index: {}]
  %s2 = inlined_call_operand.vmem [shape: f32[1,32], index: 2, kind: input, shape index: {}]
  %s3 = inlined_call_operand.hbm [shape: f32[32,128], index: 3, kind: output, shape index: {}]
  %s4 = sld [smem:[#allocation0]]
  $region22: #{tpu_custom_call.1} parent=0
    _
  %s6 = ssub.s32 1, %s4
  %s7 = scalar_select 0, %s6, %s4
  $region1: #{tpu_custom_call.1} parent=0
    #allocation2 [shape = 'u8[16384]{0}', space=vmem, size = 0x4000, scoped, tag = 'output window, operand 0, single buffered']
    #allocation3 [shape = 's32[1]{0}', space=sflag, size = 0x4, scoped, tag = 'scoped memory for tpu_custom_call.1']
    %8 = vsyncpa [#allocation3], 0
    // Predicated region
    $region2: #{tpu_custom_call.1} parent=1 // pred_check
      _
    $region3: #{tpu_custom_call.1} parent=1 // pred_check_branch
      %10 = sbr.rel (0) target = $region5
    $region4: #{tpu_custom_call.1} parent=1 // pred_region
      _
    $region5: #{tpu_custom_call.1} parent=1 // pred_fallthru
      _
    // Predicated region
    $region6: #{tpu_custom_call.1} parent=1 // pred_check
      _
    $region7: #{tpu_custom_call.1} parent=1 // pred_check_branch
      %12 = sbr.rel (0) target = $region9
    $region8: #{tpu_custom_call.1} parent=1 // pred_region
      _
    $region9: #{tpu_custom_call.1} parent=1 // pred_fallthru
      _
    // Predicated region
    $region10: #{tpu_custom_call.1} parent=1 // pred_check
      _
    $region11: #{tpu_custom_call.1} parent=1 // pred_check_branch
      %14 = sbr.rel (0) target = $region13
    $region12: #{tpu_custom_call.1} parent=1 // pred_region
      _
    $region13: #{tpu_custom_call.1} parent=1 // pred_fallthru
      _
    %v15 = vld [vmem:[%s0] sm:$0xff]
    %v16 = vld [vmem:[%s0 + $0x8] sm:$0xff]
    %v17 = vld [vmem:[%s0 + $0x10] sm:$0xff]
    %v18 = vld [vmem:[%s0 + $0x18] sm:$0xff]
    %v19 = vld [vmem:[%s0 + $0x20] sm:$0xff]
    %v20 = vld [vmem:[%s0 + $0x28] sm:$0xff]
    %v21 = vld [vmem:[%s0 + $0x30] sm:$0xff]
    %v22 = vld [vmem:[%s0 + $0x38] sm:$0xff]
    %v23 = vld [vmem:[%s0 + $0x40] sm:$0xff]
    %v24 = vld [vmem:[%s0 + $0x48] sm:$0xff]
    %v25 = vld [vmem:[%s0 + $0x50] sm:$0xff]
    %v26 = vld [vmem:[%s0 + $0x58] sm:$0xff]
    %v27 = vld [vmem:[%s0 + $0x60] sm:$0xff]
    %v28 = vld [vmem:[%s0 + $0x68] sm:$0xff]
    %v29 = vld [vmem:[%s0 + $0x70] sm:$0xff]
    %v30 = vld [vmem:[%s0 + $0x78] sm:$0xff]
    %v31 = vld [vmem:[%s1] sm:$0xff]
    %v32 = vld [vmem:[%s1 + $0x8] sm:$0xff]
    %v33 = vld [vmem:[%s1 + $0x10] sm:$0xff]
    %v34 = vld [vmem:[%s1 + $0x18] sm:$0xff]
    %v35 = vld [vmem:[%s2] sm:$0x1]
    %v37 = vperm.slane %v35, 0
    %vm39 = vcmask 261120
    %v41 = vsel %vm39, %v15, 0
    %v44 = vsel %vm39, %v16, 0
    %v47 = vsel %vm39, %v17, 0
    %v50 = vsel %vm39, %v18, 0
    %v53 = vsel %vm39, %v19, 0
    %v56 = vsel %vm39, %v20, 0
    %v59 = vsel %vm39, %v21, 0
    %v62 = vsel %vm39, %v22, 0
    %v65 = vsel %vm39, %v23, 0
    %v68 = vsel %vm39, %v24, 0
    %v71 = vsel %vm39, %v25, 0
    %v74 = vsel %vm39, %v26, 0
    %v77 = vsel %vm39, %v27, 0
    %v80 = vsel %vm39, %v28, 0
    %v83 = vsel %vm39, %v29, 0
    %v86 = vsel %vm39, %v30, 0
    %88 = vmatpush.msra.mxu0 0.0
    %89 = vmatpush.msra.mxu0 0.0
    %90 = vmatpush.msra.mxu0 0.0
    %91 = vmatpush.msra.mxu0 0.0
    %92 = vmatpush.msra.mxu0 0.0
    %93 = vmatpush.msra.mxu0 0.0
    %94 = vmatpush.msra.mxu0 0.0
    %95 = vmatpush.msra.mxu0 0.0
    %96 = vmatpush.msra.mxu0 0.0
    %97 = vmatpush.msra.mxu0 0.0
    %98 = vmatpush.msra.mxu0 0.0
    %99 = vmatpush.msra.mxu0 0.0
    %100 = vmatpush.msra.mxu0 %v34
    %101 = vmatpush.msra.mxu0 %v33
    %102 = vmatpush.msra.mxu0 %v32
    %103 = vmatpush.msra.mxu0 %v31
    %104 = vmatmul.f32.gmra.mxu0 %v41
    %v105 = vpop.f32.mrf.mxu0
    %v106 = vadd.f32 %v37, %v105
    %107 = vmatmul.f32.gmra.mxu0 %v44
    %v108 = vpop.f32.mrf.mxu0
    %v109 = vadd.f32 %v37, %v108
    %110 = vmatmul.f32.gmra.mxu0 %v47
    %v111 = vpop.f32.mrf.mxu0
    %v112 = vadd.f32 %v37, %v111
    %113 = vmatmul.f32.gmra.mxu0 %v50
    %v114 = vpop.f32.mrf.mxu0
    %v115 = vadd.f32 %v37, %v114
    %116 = vmatmul.f32.gmra.mxu0 %v53
    %v117 = vpop.f32.mrf.mxu0
    %v118 = vadd.f32 %v37, %v117
    %119 = vmatmul.f32.gmra.mxu0 %v56
    %v120 = vpop.f32.mrf.mxu0
    %v121 = vadd.f32 %v37, %v120
    %122 = vmatmul.f32.gmra.mxu0 %v59
    %v123 = vpop.f32.mrf.mxu0
    %v124 = vadd.f32 %v37, %v123
    %125 = vmatmul.f32.gmra.mxu0 %v62
    %v126 = vpop.f32.mrf.mxu0
    %v127 = vadd.f32 %v37, %v126
    %128 = vmatmul.f32.gmra.mxu0 %v65
    %v129 = vpop.f32.mrf.mxu0
    %v130 = vadd.f32 %v37, %v129
    %131 = vmatmul.f32.gmra.mxu0 %v68
    %v132 = vpop.f32.mrf.mxu0
    %v133 = vadd.f32 %v37, %v132
    %134 = vmatmul.f32.gmra.mxu0 %v71
    %v135 = vpop.f32.mrf.mxu0
    %v136 = vadd.f32 %v37, %v135
    %137 = vmatmul.f32.gmra.mxu0 %v74
    %v138 = vpop.f32.mrf.mxu0
    %v139 = vadd.f32 %v37, %v138
    %140 = vmatmul.f32.gmra.mxu0 %v77
    %v141 = vpop.f32.mrf.mxu0
    %v142 = vadd.f32 %v37, %v141
    %143 = vmatmul.f32.gmra.mxu0 %v80
    %v144 = vpop.f32.mrf.mxu0
    %v145 = vadd.f32 %v37, %v144
    %146 = vmatmul.f32.gmra.mxu0 %v83
    %v147 = vpop.f32.mrf.mxu0
    %v148 = vadd.f32 %v37, %v147
    %149 = vmatmul.f32.gmra.mxu0 %v86
    %v150 = vpop.f32.mrf.mxu0
    %v151 = vadd.f32 %v37, %v150
    %152 = vdwg.mxu0
    %v153 = vmul.f32 %v106, 3.0
    %v154 = vmul.f32 %v109, 3.0
    %v155 = vmul.f32 %v112, 3.0
    %v156 = vmul.f32 %v115, 3.0
    %v157 = vmul.f32 %v118, 3.0
    %v158 = vmul.f32 %v121, 3.0
    %v159 = vmul.f32 %v124, 3.0
    %v160 = vmul.f32 %v127, 3.0
    %v161 = vmul.f32 %v130, 3.0
    %v162 = vmul.f32 %v133, 3.0
    %v163 = vmul.f32 %v136, 3.0
    %v164 = vmul.f32 %v139, 3.0
    %v165 = vmul.f32 %v142, 3.0
    %v166 = vmul.f32 %v145, 3.0
    %v167 = vmul.f32 %v148, 3.0
    %v168 = vmul.f32 %v151, 3.0
    %v169 = vtanh.pop %v153
    %v170 = vtanh.pop %v154
    %v171 = vtanh.pop %v155
    %v172 = vtanh.pop %v156
    %v173 = vtanh.pop %v157
    %v174 = vtanh.pop %v158
    %v175 = vtanh.pop %v159
    %v176 = vtanh.pop %v160
    %v177 = vtanh.pop %v161
    %v178 = vtanh.pop %v162
    %v179 = vtanh.pop %v163
    %v180 = vtanh.pop %v164
    %v181 = vtanh.pop %v165
    %v182 = vtanh.pop %v166
    %v183 = vtanh.pop %v167
    %v184 = vtanh.pop %v168
    %185 = vxpose.xlu0.b32.start [1/16] %v169, 128
    %186 = vxpose.xlu0.b32.cont [2/16] %v170, 128
    %187 = vxpose.xlu0.b32.cont [3/16] %v171, 128
    %188 = vxpose.xlu0.b32.cont [4/16] %v172, 128
    %189 = vxpose.xlu0.b32.cont [5/16] %v173, 128
    %190 = vxpose.xlu0.b32.cont [6/16] %v174, 128
    %191 = vxpose.xlu0.b32.cont [7/16] %v175, 128
    %192 = vxpose.xlu0.b32.cont [8/16] %v176, 128
    %193 = vxpose.xlu0.b32.cont [9/16] %v177, 128
    %194 = vxpose.xlu0.b32.cont [10/16] %v178, 128
    %195 = vxpose.xlu0.b32.cont [11/16] %v179, 128
    %196 = vxpose.xlu0.b32.cont [12/16] %v180, 128
    %197 = vxpose.xlu0.b32.cont [13/16] %v181, 128
    %198 = vxpose.xlu0.b32.cont [14/16] %v182, 128
    %199 = vxpose.xlu0.b32.cont [15/16] %v183, 128
    %200 = vxpose.xlu0.b32.end [16/16] %v184, 128
    %v201 = vpop.trf.xlu0
    %v202 = vpop.trf.xlu0
    %v203 = vpop.trf.xlu0
    %v204 = vpop.trf.xlu0
    %v205 = vpop.trf.xlu0
    %v206 = vpop.trf.xlu0
    %v207 = vpop.trf.xlu0
    %v208 = vpop.trf.xlu0
    %v209 = vpop.trf.xlu0
    %v210 = vpop.trf.xlu0
    %v211 = vpop.trf.xlu0
    %v212 = vpop.trf.xlu0
    %v213 = vpop.trf.xlu0
    %v214 = vpop.trf.xlu0
    %v215 = vpop.trf.xlu0
    %v216 = vpop.trf.xlu0
    %217 = vst [vmem:[#allocation2] sm:$0xff] %v201
    %218 = vst [vmem:[#allocation2 + $0x8] sm:$0xff] %v202
    %219 = vst [vmem:[#allocation2 + $0x10] sm:$0xff] %v203
    %220 = vst [vmem:[#allocation2 + $0x18] sm:$0xff] %v204
    // Predicated region
    $region14: #{tpu_custom_call.1} parent=1 // pred_check
      _
    $region15: #{tpu_custom_call.1} parent=1 // pred_check_branch
      %222 = sbr.rel (0) target = $region17
    $region16: #{tpu_custom_call.1} parent=1 // pred_region
      %224 = vsyncadd [#allocation3], 0
      %s225 = sshll.u32 [#allocation2], 4
      %s226 = int_to_ptr.vmem [resolvable:$true] %s225
      %s227 = sshll.u32 %s3, 4
      %s228 = int_to_ptr.hbm [resolvable:$true] %s227
      %233 = dma.vmem_to_hbm [thread:$0]  %s226, 512, %s228, [#allocation3], 128, 128, 8
    $region17: #{tpu_custom_call.1} parent=1 // pred_fallthru
      _
    // Predicated region
    $region18: #{tpu_custom_call.1} parent=1 // pred_check
      _
    $region19: #{tpu_custom_call.1} parent=1 // pred_check_branch
      %235 = sbr.rel (0) target = $region21
    $region20: #{tpu_custom_call.1} parent=1 // pred_region
      %237 = dma.done [#allocation3], 512
    $region21: #{tpu_custom_call.1} parent=1 // pred_fallthru
      _
    %238 = vsyncpa [#allocation3], 1

</llo_original>
